<compile_context>
chip_gen: v5e
topology: v5e:2x2
jax: 0.10.0
libtpu: 0.0.40
codegen_flags: <defaults>
</compile_context>

<pallas_src>
import functools

import jax
import jax.numpy as jnp
from jax.experimental import pallas as pl
from jax.experimental.pallas import tpu as pltpu


NUM_OPERATIONS = 16
_LANE = 128
_SUBLANE = 8
_SMALL_K_THRESHOLD = 64      # input_size at/below which we skip the MXU gather

# Per-op coefficients [const, a, b, a*b] in the exact order used by
# DifferentiableLogicGate._compute_continuous_operations.
_OP_COEFFS = (
    (0.0,  0.0,  0.0,  0.0),   # 0: FALSE
    (0.0,  0.0,  0.0,  1.0),   # 1: AND                  a*b
    (0.0,  1.0,  0.0, -1.0),   # 2: A AND NOT B          a - a*b
    (0.0,  1.0,  0.0,  0.0),   # 3: A
    (0.0,  0.0,  1.0, -1.0),   # 4: NOT A AND B          b - a*b
    (0.0,  0.0,  1.0,  0.0),   # 5: B
    (0.0,  1.0,  1.0, -2.0),   # 6: XOR                  a + b - 2ab
    (0.0,  1.0,  1.0, -1.0),   # 7: OR                   a + b - ab
    (1.0, -1.0, -1.0,  1.0),   # 8: NOR                  1 - (a + b - ab)
    (1.0, -1.0, -1.0,  2.0),   # 9: XNOR                 1 - (a + b - 2ab)
    (1.0,  0.0, -1.0,  0.0),   # 10: NOT B
    (1.0,  0.0, -1.0,  1.0),   # 11: A OR NOT B          1 - b + ab
    (1.0, -1.0,  0.0,  0.0),   # 12: NOT A
    (1.0, -1.0,  0.0,  1.0),   # 13: NOT A OR B          1 - a + ab
    (1.0,  0.0,  0.0, -1.0),   # 14: NAND                1 - ab
    (1.0,  0.0,  0.0,  0.0),   # 15: TRUE
)


# --------------------------------------------------------------------------- #
# Kernels
# --------------------------------------------------------------------------- #
def _epilogue(a, b, c):
    """out = C0 + Cb*b + a*(Ca + Cab*b) — avoids the explicit a*b temporary."""
    c0, ca, cb, cab = c[0:1, :], c[1:2, :], c[2:3, :], c[3:4, :]
    return c0 + cb * b + a * (ca + cab * b)


def _logic_kernel_mxu(x_ref, oh1_ref, oh2_ref, c_ref, o_ref):
    """Fused one-hot-matmul gather (MXU) + 4-coefficient epilogue (VPU).

    x_ref:   (tile_b, input_size)  f32
    oh*_ref: (input_size, tile_g)  bf16 (exact 0/1 one-hot columns)
    c_ref:   (4, tile_g)           f32
    o_ref:   (tile_b, tile_g)      f32
    """
    # clamp(x)[:, conn] == clamp(x[:, conn]), so clamp once on the small x tile.
    x = jnp.clip(x_ref[...], 0.0, 1.0)

    # bf16 one-hots are exact; Precision.HIGH (bf16x3) keeps the f32 x exact
    # through the gather while using half the MXU passes of HIGHEST.
    oh1 = oh1_ref[...].astype(jnp.float32)
    oh2 = oh2_ref[...].astype(jnp.float32)
    a = jnp.dot(x, oh1, preferred_element_type=jnp.float32,
                precision=jax.lax.Precision.HIGH)
    b = jnp.dot(x, oh2, preferred_element_type=jnp.float32,
                precision=jax.lax.Precision.HIGH)

    o_ref[...] = _epilogue(a, b, c_ref[...])


def _logic_kernel_small(x_ref, c1_ref, c2_ref, c_ref, o_ref):
    """Small-input_size escape hatch: VPU-select gather, no MXU.

    x_ref:   (tile_b, input_size)  f32
    c*_ref:  (1, tile_g)           int32 connection indices
    c_ref:   (4, tile_g)           f32
    o_ref:   (tile_b, tile_g)      f32
    """
    x = jnp.clip(x_ref[...], 0.0, 1.0)          # (tile_b, I)
    c1 = c1_ref[...]                             # (1, tile_g)
    c2 = c2_ref[...]

    a = jnp.zeros(o_ref.shape, jnp.float32)
    b = jnp.zeros(o_ref.shape, jnp.float32)
    for i in range(x.shape[1]):                  # static unroll, I <= 64
        xi = x[:, i:i + 1]                       # (tile_b, 1)
        a = jnp.where(c1 == i, xi, a)
        b = jnp.where(c2 == i, xi, b)

    o_ref[...] = _epilogue(a, b, c_ref[...])


# --------------------------------------------------------------------------- #
# Tiling / VMEM budget
# --------------------------------------------------------------------------- #
def _round_up(x, m):
    return ((x + m - 1) // m) * m


def _vmem_capacity_bytes():
    try:
        return int(pltpu.get_tpu_info().vmem_capacity_bytes)
    except Exception:
        return 64 << 20          # conservative (v7x per-TC capacity)


def _block_vmem_bytes(tile_b, tile_g, input_size, use_mxu):
    """Rough working-set estimate (bytes) for one grid step (double-buffered
    pipeline blocks + in-kernel f32 temporaries)."""
    x_blk = 2 * tile_b * input_size * 4
    out_blk = 2 * tile_b * tile_g * 4
    coef_blk = 2 * 4 * tile_g * 4
    if use_mxu:
        oh_blk = 2 * 2 * input_size * tile_g * 2     # two bf16 one-hot tiles
        oh_f32 = 2 * input_size * tile_g * 4         # in-kernel f32 upcasts
        tmp = 3 * tile_b * tile_g * 4                # a, b, epilogue temp
        return x_blk + out_blk + coef_blk + oh_blk + oh_f32 + tmp
    conn_blk = 2 * 2 * tile_g * 4
    tmp = 3 * tile_b * tile_g * 4
    return x_blk + out_blk + coef_blk + conn_blk + tmp


def _auto_config(batch, input_size, num_gates, use_mxu):
    """Generation/VMEM-budget aware tile selection + vmem_limit_bytes."""
    cap = _vmem_capacity_bytes()
    big_vmem = cap >= (96 << 20)        # v5e/v6e have 128 MiB; v7x has 64 MiB
    budget = int(cap * 0.7)

    # Gate tile: lane-dense; stays resident across the inner batch loop.
    if num_gates <= _LANE:
        tile_g = num_gates
    else:
        tile_g = min(_round_up(num_gates, _LANE), 4096 if big_vmem else 2048)
        # Prefer >= 2 gate tiles so megacore (v7x) splits the GATE axis and the
        # two TensorCores stream disjoint one-hot columns.
        if pl.cdiv(num_gates, tile_g) < 2 and num_gates >= 2 * _LANE:
            tile_g = _round_up(pl.cdiv(num_gates, 2), _LANE)

    # Batch tile: as large as the budget allows (amortizes per-step overhead).
    tile_b = min(_round_up(batch, _SUBLANE), 1024 if big_vmem else 512)

    while _block_vmem_bytes(tile_b, tile_g, input_size, use_mxu) > budget:
        if tile_g > _LANE and input_size >= tile_b:
            new_g = max(_LANE, (tile_g // 2 // _LANE) * _LANE)
            tile_g = _LANE if new_g == tile_g else new_g
        elif tile_b > _SUBLANE:
            new_b = max(_SUBLANE, (tile_b // 2 // _SUBLANE) * _SUBLANE)
            if new_b == tile_b:
                break
            tile_b = new_b
        else:
            break

    need = _block_vmem_bytes(tile_b, tile_g, input_size, use_mxu)
    vmem_limit = int(min(cap - (16 << 20), max(32 << 20, 2 * need + (8 << 20))))
    return tile_b, tile_g, vmem_limit


# --------------------------------------------------------------------------- #
# Wrapper-side precomputation (hoisted out of the per-call path)
# --------------------------------------------------------------------------- #
def precompute_connection_onehots(connections1, connections2, input_size):
    """Build the (input_size, num_gates) bf16 one-hot gather matrices ONCE at
    layer-init time (connections are static).  bf16 represents 0/1 exactly and
    halves HBM/VMEM bytes of the dominant operands."""
    conn1 = jnp.asarray(connections1, jnp.int32)
    conn2 = jnp.asarray(connections2, jnp.int32)
    # PyTorch forward: if input2_idx >= x.shape[1], reuse input1_idx.
    conn2 = jnp.where(conn2 >= input_size, conn1, conn2)
    # Note: connections1 entries >= input_size would raise in PyTorch; the
    # module never generates them, so we assume in-range indices here.
    oh1 = jax.nn.one_hot(conn1, input_size, dtype=jnp.bfloat16).T   # (I, G)
    oh2 = jax.nn.one_hot(conn2, input_size, dtype=jnp.bfloat16).T   # (I, G)
    return oh1, oh2


def _coefficients(gate_logits, temperature):
    gate_probs = jax.nn.softmax(gate_logits.astype(jnp.float32) / temperature,
                                axis=-1)                    # (G, 16)
    op_coeffs = jnp.asarray(_OP_COEFFS, dtype=jnp.float32)  # (16, 4)
    return (gate_probs @ op_coeffs).T                       # (4, G)


# --------------------------------------------------------------------------- #
# Jitted implementations
# --------------------------------------------------------------------------- #
@functools.partial(jax.jit, static_argnames=("tile_b", "tile_g", "vmem_limit"))
def _logic_layer_mxu_impl(x, gate_logits, temperature, oh1, oh2,
                          *, tile_b, tile_g, vmem_limit):
    batch, input_size = x.shape
    num_gates = gate_logits.shape[0]
    coeffs = _coefficients(gate_logits, temperature)

    # Gate axis OUTER, batch axis INNER: one-hot tiles keep a constant block
    # index across the inner loop -> DMA'd once per gate tile.
    grid = (pl.cdiv(num_gates, tile_g), pl.cdiv(batch, tile_b))
    return pl.pallas_call(
        _logic_kernel_mxu,
        out_shape=jax.ShapeDtypeStruct((batch, num_gates), jnp.float32),
        grid_spec=pltpu.PrefetchScalarGridSpec(
            num_scalar_prefetch=0,
            grid=grid,
            in_specs=[
                pl.BlockSpec((tile_b, input_size), lambda j, i: (i, 0)),   # x
                pl.BlockSpec((input_size, tile_g), lambda j, i: (0, j)),   # oh1
                pl.BlockSpec((input_size, tile_g), lambda j, i: (0, j)),   # oh2
                pl.BlockSpec((4, tile_g),          lambda j, i: (0, j)),   # C
            ],
            out_specs=pl.BlockSpec((tile_b, tile_g), lambda j, i: (i, j)),
        ),
        compiler_params=pltpu.CompilerParams(
            dimension_semantics=("parallel", "arbitrary"),
            vmem_limit_bytes=vmem_limit,
        ),
    )(x.astype(jnp.float32), oh1, oh2, coeffs)


@functools.partial(jax.jit, static_argnames=("tile_b", "tile_g", "vmem_limit"))
def _logic_layer_small_impl(x, gate_logits, temperature, connections1,
                            connections2, *, tile_b, tile_g, vmem_limit):
    batch, input_size = x.shape
    num_gates = gate_logits.shape[0]
    coeffs = _coefficients(gate_logits, temperature)

    conn1 = jnp.asarray(connections1, jnp.int32)
    conn2 = jnp.asarray(connections2, jnp.int32)
    conn2 = jnp.where(conn2 >= input_size, conn1, conn2)
    conn1 = conn1.reshape(1, num_gates)
    conn2 = conn2.reshape(1, num_gates)

    grid = (pl.cdiv(num_gates, tile_g), pl.cdiv(batch, tile_b))
    return pl.pallas_call(
        _logic_kernel_small,
        out_shape=jax.ShapeDtypeStruct((batch, num_gates), jnp.float32),
        grid_spec=pltpu.PrefetchScalarGridSpec(
            num_scalar_prefetch=0,
            grid=grid,
            in_specs=[
                pl.BlockSpec((tile_b, input_size), lambda j, i: (i, 0)),   # x
                pl.BlockSpec((1, tile_g),          lambda j, i: (0, j)),   # conn1
                pl.BlockSpec((1, tile_g),          lambda j, i: (0, j)),   # conn2
                pl.BlockSpec((4, tile_g),          lambda j, i: (0, j)),   # C
            ],
            out_specs=pl.BlockSpec((tile_b, tile_g), lambda j, i: (i, j)),
        ),
        compiler_params=pltpu.CompilerParams(
            dimension_semantics=("parallel", "arbitrary"),
            vmem_limit_bytes=vmem_limit,
        ),
    )(x.astype(jnp.float32), conn1, conn2, coeffs)


# --------------------------------------------------------------------------- #
# Public API
# --------------------------------------------------------------------------- #
def differentiable_logic_layer(x, gate_logits, connections1, connections2,
                               temperature=1.0, *, onehots=None,
                               tile_b=None, tile_g=None):
    """Forward pass of DifferentiableLogicLayer.

    x:            (batch, input_size) float
    gate_logits:  (num_gates, 16) float32
    connections1: (num_gates,) int32
    connections2: (num_gates,) int32
    onehots:      optional precomputed (oh1, oh2) from
                  precompute_connection_onehots (hoists the O(I*G) one-hot
                  construction out of the steady-state path).
    returns:      (batch, num_gates) float32
    """
    batch, input_size = x.shape
    num_gates = gate_logits.shape[0]
    use_mxu = input_size > _SMALL_K_THRESHOLD

    auto_b, auto_g, vmem_limit = _auto_config(batch, input_size, num_gates,
                                              use_mxu)
    tb = auto_b if tile_b is None else tile_b
    tg = auto_g if tile_g is None else tile_g
    temp = jnp.float32(temperature)

    if use_mxu:
        if onehots is None:
            onehots = precompute_connection_onehots(connections1, connections2,
                                                    input_size)
        oh1, oh2 = onehots
        return _logic_layer_mxu_impl(x, gate_logits, temp, oh1, oh2,
                                     tile_b=tb, tile_g=tg,
                                     vmem_limit=vmem_limit)
    return _logic_layer_small_impl(x, gate_logits, temp,
                                   jnp.asarray(connections1),
                                   jnp.asarray(connections2),
                                   tile_b=tb, tile_g=tg,
                                   vmem_limit=vmem_limit)


def make_params(num_gates, input_size):
    """Deterministic parameter / connection construction mirroring __init__."""
    logits = jnp.zeros((num_gates, NUM_OPERATIONS), dtype=jnp.float32)
    logits = logits.at[:, 3].set(2.0).at[:, 5].set(2.0)

    gate_ids = jnp.arange(num_gates, dtype=jnp.int32)
    conn1 = gate_ids % input_size
    conn2 = ((gate_ids + 1) % input_size if input_size > 1
             else jnp.zeros_like(gate_ids))
    return logits, conn1, conn2


def _reference(x, gate_logits, conn1, conn2, temperature=1.0):
    """Pure-JAX reference mirroring the PyTorch forward, for verification."""
    conn2 = jnp.where(conn2 >= x.shape[1], conn1, conn2)
    a = jnp.clip(x[:, conn1], 0.0, 1.0)
    b = jnp.clip(x[:, conn2], 0.0, 1.0)
    ab = a * b
    one = jnp.ones_like(a)
    ops = jnp.stack([
        jnp.zeros_like(a), ab, a - ab, a, b - ab, b,
        a + b - 2 * ab, a + b - ab, one - (a + b - ab), one - (a + b - 2 * ab),
        one - b, one - b + ab, one - a, one - a + ab, one - ab, one,
    ], axis=-1)                                             # (B, G, 16)
    probs = jax.nn.softmax(gate_logits / temperature, axis=-1)  # (G, 16)
    return jnp.sum(probs[None, :, :] * ops, axis=-1)


if __name__ == "__main__":
    key = jax.random.PRNGKey(0)
    k1, k2, k3 = jax.random.split(key, 3)

    # --- Case 1: small input_size -> VPU-select (escape hatch) path ---------
    batch, input_size, num_gates = 16, 8, 16
    x = jax.random.uniform(k1, (batch, input_size), dtype=jnp.float32)
    gate_logits, conn1, conn2 = make_params(num_gates, input_size)
    gate_logits = gate_logits + 0.1 * jax.random.normal(k3, gate_logits.shape)

    out = differentiable_logic_layer(x, gate_logits, conn1, conn2, 1.0)
    out = jax.block_until_ready(out)
    ref = _reference(x, gate_logits, conn1, conn2, 1.0)
    assert out.shape == (batch, num_gates)
    assert jnp.allclose(out, ref, atol=1e-5, rtol=1e-5), float(
        jnp.max(jnp.abs(out - ref)))

    # --- Case 2: larger input_size -> fused one-hot MXU gather path ---------
    batch, input_size, num_gates = 32, 128, 256
    x = jax.random.uniform(k2, (batch, input_size), dtype=jnp.float32)
    gate_logits, conn1, conn2 = make_params(num_gates, input_size)
    gate_logits = gate_logits + 0.1 * jax.random.normal(
        jax.random.PRNGKey(1), gate_logits.shape)
    onehots = precompute_connection_onehots(conn1, conn2, input_size)  # once

    out = differentiable_logic_layer(x, gate_logits, conn1, conn2, 0.7,
                                     onehots=onehots)
    out = jax.block_until_ready(out)
    ref = _reference(x, gate_logits, conn1, conn2, 0.7)
    assert out.shape == (batch, num_gates)
    assert jnp.allclose(out, ref, atol=1e-5, rtol=1e-5), float(
        jnp.max(jnp.abs(out - ref)))

    print("KERNEL_OK")
</pallas_src>

<mosaic_0001>
module attributes {stable_mosaic.version = 11 : i64} {
  func.func @_logic_kernel_small(%arg0: i32, %arg1: i32, %arg2: memref<16x8xf32, #tpu.memory_space<vmem>>, %arg3: memref<1x16xi32, #tpu.memory_space<vmem>>, %arg4: memref<1x16xi32, #tpu.memory_space<vmem>>, %arg5: memref<4x16xf32, #tpu.memory_space<vmem>>, %arg6: memref<16x16xf32, #tpu.memory_space<vmem>>) attributes {dimension_semantics = [#tpu.dimension_semantics<parallel>, #tpu.dimension_semantics<arbitrary>], iteration_bounds = array<i64: 1, 1>, scalar_prefetch = 0 : i64, scratch_operands = 0 : i64, tpu.core_type = #tpu.core_type<tc>, window_params = [{transform_indices = @transform_0, window_bounds = array<i64: 16, 8>}, {transform_indices = @transform_1, window_bounds = array<i64: 1, 16>}, {transform_indices = @transform_2, window_bounds = array<i64: 1, 16>}, {transform_indices = @transform_3, window_bounds = array<i64: 4, 16>}, {transform_indices = @transform_4, window_bounds = array<i64: 16, 16>}]} {
    %c0 = arith.constant 0 : index
    %c0_0 = arith.constant 0 : index
    %0 = vector.load %arg2[%c0, %c0_0] : memref<16x8xf32, #tpu.memory_space<vmem>>, vector<16x8xf32>
    %cst = arith.constant 0.000000e+00 : f32
    %cst_1 = arith.constant 1.000000e+00 : f32
    %1 = vector.broadcast %cst : f32 to vector<16x8xf32>
    %2 = arith.maximumf %1, %0 : vector<16x8xf32>
    %3 = vector.broadcast %cst_1 : f32 to vector<16x8xf32>
    %4 = arith.minimumf %3, %2 : vector<16x8xf32>
    %c0_2 = arith.constant 0 : index
    %c0_3 = arith.constant 0 : index
    %5 = vector.load %arg3[%c0_2, %c0_3] : memref<1x16xi32, #tpu.memory_space<vmem>>, vector<1x16xi32>
    %c0_4 = arith.constant 0 : index
    %c0_5 = arith.constant 0 : index
    %6 = vector.load %arg4[%c0_4, %c0_5] : memref<1x16xi32, #tpu.memory_space<vmem>>, vector<1x16xi32>
    %cst_6 = arith.constant 0.000000e+00 : f32
    %7 = vector.broadcast %cst_6 : f32 to vector<16x16xf32>
    %cst_7 = arith.constant 0.000000e+00 : f32
    %8 = vector.broadcast %cst_7 : f32 to vector<16x16xf32>
    %9 = vector.extract_strided_slice %4 {offsets = [0, 0], sizes = [16, 1], strides = [1, 1]} : vector<16x8xf32> to vector<16x1xf32>
    %c0_i32 = arith.constant 0 : i32
    %10 = vector.broadcast %c0_i32 : i32 to vector<1x16xi32>
    %11 = arith.cmpi eq, %5, %10 : vector<1x16xi32>
    %12 = vector.shape_cast %11 : vector<1x16xi1> to vector<1x16xi1>
    %13 = vector.broadcast %12 : vector<1x16xi1> to vector<16x16xi1>
    %14 = vector.shape_cast %9 : vector<16x1xf32> to vector<16x1xf32>
    %15 = vector.broadcast %14 : vector<16x1xf32> to vector<16x16xf32>
    %16 = arith.select %13, %15, %7 : vector<16x16xi1>, vector<16x16xf32>
    %c0_i32_8 = arith.constant 0 : i32
    %17 = vector.broadcast %c0_i32_8 : i32 to vector<1x16xi32>
    %18 = arith.cmpi eq, %6, %17 : vector<1x16xi32>
    %19 = vector.shape_cast %18 : vector<1x16xi1> to vector<1x16xi1>
    %20 = vector.broadcast %19 : vector<1x16xi1> to vector<16x16xi1>
    %21 = vector.shape_cast %9 : vector<16x1xf32> to vector<16x1xf32>
    %22 = vector.broadcast %21 : vector<16x1xf32> to vector<16x16xf32>
    %23 = arith.select %20, %22, %8 : vector<16x16xi1>, vector<16x16xf32>
    %24 = vector.extract_strided_slice %4 {offsets = [0, 1], sizes = [16, 1], strides = [1, 1]} : vector<16x8xf32> to vector<16x1xf32>
    %c1_i32 = arith.constant 1 : i32
    %25 = vector.broadcast %c1_i32 : i32 to vector<1x16xi32>
    %26 = arith.cmpi eq, %5, %25 : vector<1x16xi32>
    %27 = vector.shape_cast %26 : vector<1x16xi1> to vector<1x16xi1>
    %28 = vector.broadcast %27 : vector<1x16xi1> to vector<16x16xi1>
    %29 = vector.shape_cast %24 : vector<16x1xf32> to vector<16x1xf32>
    %30 = vector.broadcast %29 : vector<16x1xf32> to vector<16x16xf32>
    %31 = arith.select %28, %30, %16 : vector<16x16xi1>, vector<16x16xf32>
    %c1_i32_9 = arith.constant 1 : i32
    %32 = vector.broadcast %c1_i32_9 : i32 to vector<1x16xi32>
    %33 = arith.cmpi eq, %6, %32 : vector<1x16xi32>
    %34 = vector.shape_cast %33 : vector<1x16xi1> to vector<1x16xi1>
    %35 = vector.broadcast %34 : vector<1x16xi1> to vector<16x16xi1>
    %36 = vector.shape_cast %24 : vector<16x1xf32> to vector<16x1xf32>
    %37 = vector.broadcast %36 : vector<16x1xf32> to vector<16x16xf32>
    %38 = arith.select %35, %37, %23 : vector<16x16xi1>, vector<16x16xf32>
    %39 = vector.extract_strided_slice %4 {offsets = [0, 2], sizes = [16, 1], strides = [1, 1]} : vector<16x8xf32> to vector<16x1xf32>
    %c2_i32 = arith.constant 2 : i32
    %40 = vector.broadcast %c2_i32 : i32 to vector<1x16xi32>
    %41 = arith.cmpi eq, %5, %40 : vector<1x16xi32>
    %42 = vector.shape_cast %41 : vector<1x16xi1> to vector<1x16xi1>
    %43 = vector.broadcast %42 : vector<1x16xi1> to vector<16x16xi1>
    %44 = vector.shape_cast %39 : vector<16x1xf32> to vector<16x1xf32>
    %45 = vector.broadcast %44 : vector<16x1xf32> to vector<16x16xf32>
    %46 = arith.select %43, %45, %31 : vector<16x16xi1>, vector<16x16xf32>
    %c2_i32_10 = arith.constant 2 : i32
    %47 = vector.broadcast %c2_i32_10 : i32 to vector<1x16xi32>
    %48 = arith.cmpi eq, %6, %47 : vector<1x16xi32>
    %49 = vector.shape_cast %48 : vector<1x16xi1> to vector<1x16xi1>
    %50 = vector.broadcast %49 : vector<1x16xi1> to vector<16x16xi1>
    %51 = vector.shape_cast %39 : vector<16x1xf32> to vector<16x1xf32>
    %52 = vector.broadcast %51 : vector<16x1xf32> to vector<16x16xf32>
    %53 = arith.select %50, %52, %38 : vector<16x16xi1>, vector<16x16xf32>
    %54 = vector.extract_strided_slice %4 {offsets = [0, 3], sizes = [16, 1], strides = [1, 1]} : vector<16x8xf32> to vector<16x1xf32>
    %c3_i32 = arith.constant 3 : i32
    %55 = vector.broadcast %c3_i32 : i32 to vector<1x16xi32>
    %56 = arith.cmpi eq, %5, %55 : vector<1x16xi32>
    %57 = vector.shape_cast %56 : vector<1x16xi1> to vector<1x16xi1>
    %58 = vector.broadcast %57 : vector<1x16xi1> to vector<16x16xi1>
    %59 = vector.shape_cast %54 : vector<16x1xf32> to vector<16x1xf32>
    %60 = vector.broadcast %59 : vector<16x1xf32> to vector<16x16xf32>
    %61 = arith.select %58, %60, %46 : vector<16x16xi1>, vector<16x16xf32>
    %c3_i32_11 = arith.constant 3 : i32
    %62 = vector.broadcast %c3_i32_11 : i32 to vector<1x16xi32>
    %63 = arith.cmpi eq, %6, %62 : vector<1x16xi32>
    %64 = vector.shape_cast %63 : vector<1x16xi1> to vector<1x16xi1>
    %65 = vector.broadcast %64 : vector<1x16xi1> to vector<16x16xi1>
    %66 = vector.shape_cast %54 : vector<16x1xf32> to vector<16x1xf32>
    %67 = vector.broadcast %66 : vector<16x1xf32> to vector<16x16xf32>
    %68 = arith.select %65, %67, %53 : vector<16x16xi1>, vector<16x16xf32>
    %69 = vector.extract_strided_slice %4 {offsets = [0, 4], sizes = [16, 1], strides = [1, 1]} : vector<16x8xf32> to vector<16x1xf32>
    %c4_i32 = arith.constant 4 : i32
    %70 = vector.broadcast %c4_i32 : i32 to vector<1x16xi32>
    %71 = arith.cmpi eq, %5, %70 : vector<1x16xi32>
    %72 = vector.shape_cast %71 : vector<1x16xi1> to vector<1x16xi1>
    %73 = vector.broadcast %72 : vector<1x16xi1> to vector<16x16xi1>
    %74 = vector.shape_cast %69 : vector<16x1xf32> to vector<16x1xf32>
    %75 = vector.broadcast %74 : vector<16x1xf32> to vector<16x16xf32>
    %76 = arith.select %73, %75, %61 : vector<16x16xi1>, vector<16x16xf32>
    %c4_i32_12 = arith.constant 4 : i32
    %77 = vector.broadcast %c4_i32_12 : i32 to vector<1x16xi32>
    %78 = arith.cmpi eq, %6, %77 : vector<1x16xi32>
    %79 = vector.shape_cast %78 : vector<1x16xi1> to vector<1x16xi1>
    %80 = vector.broadcast %79 : vector<1x16xi1> to vector<16x16xi1>
    %81 = vector.shape_cast %69 : vector<16x1xf32> to vector<16x1xf32>
    %82 = vector.broadcast %81 : vector<16x1xf32> to vector<16x16xf32>
    %83 = arith.select %80, %82, %68 : vector<16x16xi1>, vector<16x16xf32>
    %84 = vector.extract_strided_slice %4 {offsets = [0, 5], sizes = [16, 1], strides = [1, 1]} : vector<16x8xf32> to vector<16x1xf32>
    %c5_i32 = arith.constant 5 : i32
    %85 = vector.broadcast %c5_i32 : i32 to vector<1x16xi32>
    %86 = arith.cmpi eq, %5, %85 : vector<1x16xi32>
    %87 = vector.shape_cast %86 : vector<1x16xi1> to vector<1x16xi1>
    %88 = vector.broadcast %87 : vector<1x16xi1> to vector<16x16xi1>
    %89 = vector.shape_cast %84 : vector<16x1xf32> to vector<16x1xf32>
    %90 = vector.broadcast %89 : vector<16x1xf32> to vector<16x16xf32>
    %91 = arith.select %88, %90, %76 : vector<16x16xi1>, vector<16x16xf32>
    %c5_i32_13 = arith.constant 5 : i32
    %92 = vector.broadcast %c5_i32_13 : i32 to vector<1x16xi32>
    %93 = arith.cmpi eq, %6, %92 : vector<1x16xi32>
    %94 = vector.shape_cast %93 : vector<1x16xi1> to vector<1x16xi1>
    %95 = vector.broadcast %94 : vector<1x16xi1> to vector<16x16xi1>
    %96 = vector.shape_cast %84 : vector<16x1xf32> to vector<16x1xf32>
    %97 = vector.broadcast %96 : vector<16x1xf32> to vector<16x16xf32>
    %98 = arith.select %95, %97, %83 : vector<16x16xi1>, vector<16x16xf32>
    %99 = vector.extract_strided_slice %4 {offsets = [0, 6], sizes = [16, 1], strides = [1, 1]} : vector<16x8xf32> to vector<16x1xf32>
    %c6_i32 = arith.constant 6 : i32
    %100 = vector.broadcast %c6_i32 : i32 to vector<1x16xi32>
    %101 = arith.cmpi eq, %5, %100 : vector<1x16xi32>
    %102 = vector.shape_cast %101 : vector<1x16xi1> to vector<1x16xi1>
    %103 = vector.broadcast %102 : vector<1x16xi1> to vector<16x16xi1>
    %104 = vector.shape_cast %99 : vector<16x1xf32> to vector<16x1xf32>
    %105 = vector.broadcast %104 : vector<16x1xf32> to vector<16x16xf32>
    %106 = arith.select %103, %105, %91 : vector<16x16xi1>, vector<16x16xf32>
    %c6_i32_14 = arith.constant 6 : i32
    %107 = vector.broadcast %c6_i32_14 : i32 to vector<1x16xi32>
    %108 = arith.cmpi eq, %6, %107 : vector<1x16xi32>
    %109 = vector.shape_cast %108 : vector<1x16xi1> to vector<1x16xi1>
    %110 = vector.broadcast %109 : vector<1x16xi1> to vector<16x16xi1>
    %111 = vector.shape_cast %99 : vector<16x1xf32> to vector<16x1xf32>
    %112 = vector.broadcast %111 : vector<16x1xf32> to vector<16x16xf32>
    %113 = arith.select %110, %112, %98 : vector<16x16xi1>, vector<16x16xf32>
    %114 = vector.extract_strided_slice %4 {offsets = [0, 7], sizes = [16, 1], strides = [1, 1]} : vector<16x8xf32> to vector<16x1xf32>
    %c7_i32 = arith.constant 7 : i32
    %115 = vector.broadcast %c7_i32 : i32 to vector<1x16xi32>
    %116 = arith.cmpi eq, %5, %115 : vector<1x16xi32>
    %117 = vector.shape_cast %116 : vector<1x16xi1> to vector<1x16xi1>
    %118 = vector.broadcast %117 : vector<1x16xi1> to vector<16x16xi1>
    %119 = vector.shape_cast %114 : vector<16x1xf32> to vector<16x1xf32>
    %120 = vector.broadcast %119 : vector<16x1xf32> to vector<16x16xf32>
    %121 = arith.select %118, %120, %106 : vector<16x16xi1>, vector<16x16xf32>
    %c7_i32_15 = arith.constant 7 : i32
    %122 = vector.broadcast %c7_i32_15 : i32 to vector<1x16xi32>
    %123 = arith.cmpi eq, %6, %122 : vector<1x16xi32>
    %124 = vector.shape_cast %123 : vector<1x16xi1> to vector<1x16xi1>
    %125 = vector.broadcast %124 : vector<1x16xi1> to vector<16x16xi1>
    %126 = vector.shape_cast %114 : vector<16x1xf32> to vector<16x1xf32>
    %127 = vector.broadcast %126 : vector<16x1xf32> to vector<16x16xf32>
    %128 = arith.select %125, %127, %113 : vector<16x16xi1>, vector<16x16xf32>
    %c0_16 = arith.constant 0 : index
    %c0_17 = arith.constant 0 : index
    %129 = vector.load %arg5[%c0_16, %c0_17] : memref<4x16xf32, #tpu.memory_space<vmem>>, vector<4x16xf32>
    %130 = vector.extract_strided_slice %129 {offsets = [0, 0], sizes = [1, 16], strides = [1, 1]} : vector<4x16xf32> to vector<1x16xf32>
    %131 = vector.extract_strided_slice %129 {offsets = [1, 0], sizes = [1, 16], strides = [1, 1]} : vector<4x16xf32> to vector<1x16xf32>
    %132 = vector.extract_strided_slice %129 {offsets = [2, 0], sizes = [1, 16], strides = [1, 1]} : vector<4x16xf32> to vector<1x16xf32>
    %133 = vector.extract_strided_slice %129 {offsets = [3, 0], sizes = [1, 16], strides = [1, 1]} : vector<4x16xf32> to vector<1x16xf32>
    %134 = vector.broadcast %132 : vector<1x16xf32> to vector<16x16xf32>
    %135 = arith.mulf %134, %128 : vector<16x16xf32>
    %136 = vector.broadcast %130 : vector<1x16xf32> to vector<16x16xf32>
    %137 = arith.addf %136, %135 : vector<16x16xf32>
    %138 = vector.broadcast %133 : vector<1x16xf32> to vector<16x16xf32>
    %139 = arith.mulf %138, %128 : vector<16x16xf32>
    %140 = vector.broadcast %131 : vector<1x16xf32> to vector<16x16xf32>
    %141 = arith.addf %140, %139 : vector<16x16xf32>
    %142 = arith.mulf %121, %141 : vector<16x16xf32>
    %143 = arith.addf %137, %142 : vector<16x16xf32>
    %c0_18 = arith.constant 0 : index
    %c0_19 = arith.constant 0 : index
    %144 = vector.load %arg6[%c0_18, %c0_19] : memref<16x16xf32, #tpu.memory_space<vmem>>, vector<16x16xf32>
    tpu.vector_store %arg6[%c0_18, %c0_19], %143 {strides = array<i32>} : memref<16x16xf32, #tpu.memory_space<vmem>>, vector<16x16xf32>,
    return
  }
  func.func @transform_0(%arg0: i32, %arg1: i32) -> (i32, i32) {
    %c0_i32 = arith.constant 0 : i32
    %c0_i32_0 = arith.constant 0 : i32
    return %arg1, %c0_i32 : i32, i32
  }
  func.func @transform_1(%arg0: i32, %arg1: i32) -> (i32, i32) {
    %c0_i32 = arith.constant 0 : i32
    %c0_i32_0 = arith.constant 0 : i32
    return %c0_i32, %arg0 : i32, i32
  }
  func.func @transform_2(%arg0: i32, %arg1: i32) -> (i32, i32) {
    %c0_i32 = arith.constant 0 : i32
    %c0_i32_0 = arith.constant 0 : i32
    return %c0_i32, %arg0 : i32, i32
  }
  func.func @transform_3(%arg0: i32, %arg1: i32) -> (i32, i32) {
    %c0_i32 = arith.constant 0 : i32
    %c0_i32_0 = arith.constant 0 : i32
    return %c0_i32, %arg0 : i32, i32
  }
  func.func @transform_4(%arg0: i32, %arg1: i32) -> (i32, i32) {
    %c0_i32 = arith.constant 0 : i32
    return %arg1, %arg0 : i32, i32
  }
}

</mosaic_0001>

<llo_original>
// kernel: _logic_layer_small_impl.1
$region0: #{_logic_layer_small_impl.1}
  #allocation0 [shape = 'u32[]', space=smem, size = 0x4, offset = 0x4, fixed_abs, tag = 'smem constant byte address 0x4 - core index']
  #allocation1 [shape = 'u32[72,128]{1,0:T(1,128)}', space=vmem, size = 0x9000, scoped, tag = 'internal scratch']
  %s0 = inlined_call_operand.vmem [shape: f32[16,8], index: 0, kind: input, shape index: {}]
  %s1 = inlined_call_operand.vmem [shape: s32[1,16], index: 1, kind: input, shape index: {}]
  %s2 = inlined_call_operand.vmem [shape: s32[1,16], index: 2, kind: input, shape index: {}]
  %s3 = inlined_call_operand.vmem [shape: f32[4,16], index: 3, kind: input, shape index: {}]
  %s4 = inlined_call_operand.hbm [shape: f32[16,16], index: 4, kind: output, shape index: {}]
  %s5 = sld [smem:[#allocation0]]
  $region26: #{_logic_layer_small_impl.1} parent=0
    _
  %s7 = ssub.s32 1, %s5
  %s8 = scalar_select 0, %s7, %s5
  $region1: #{_logic_layer_small_impl.1} parent=0
    #allocation2 [shape = 'u8[8192]{0}', space=vmem, size = 0x2000, scoped, tag = 'output window, operand 0, single buffered']
    #allocation3 [shape = 's32[1]{0}', space=sflag, size = 0x4, scoped, tag = 'scoped memory for _logic_layer_small_impl.1']
    %9 = vsyncpa [#allocation3], 0
    // Predicated region
    $region2: #{_logic_layer_small_impl.1} parent=1 // pred_check
      _
    $region3: #{_logic_layer_small_impl.1} parent=1 // pred_check_branch
      %11 = sbr.rel (0) target = $region5
    $region4: #{_logic_layer_small_impl.1} parent=1 // pred_region
      _
    $region5: #{_logic_layer_small_impl.1} parent=1 // pred_fallthru
      _
    // Predicated region
    $region6: #{_logic_layer_small_impl.1} parent=1 // pred_check
      _
    $region7: #{_logic_layer_small_impl.1} parent=1 // pred_check_branch
      %13 = sbr.rel (0) target = $region9
    $region8: #{_logic_layer_small_impl.1} parent=1 // pred_region
      _
    $region9: #{_logic_layer_small_impl.1} parent=1 // pred_fallthru
      _
    // Predicated region
    $region10: #{_logic_layer_small_impl.1} parent=1 // pred_check
      _
    $region11: #{_logic_layer_small_impl.1} parent=1 // pred_check_branch
      %15 = sbr.rel (0) target = $region13
    $region12: #{_logic_layer_small_impl.1} parent=1 // pred_region
      _
    $region13: #{_logic_layer_small_impl.1} parent=1 // pred_fallthru
      _
    // Predicated region
    $region14: #{_logic_layer_small_impl.1} parent=1 // pred_check
      _
    $region15: #{_logic_layer_small_impl.1} parent=1 // pred_check_branch
      %17 = sbr.rel (0) target = $region17
    $region16: #{_logic_layer_small_impl.1} parent=1 // pred_region
      _
    $region17: #{_logic_layer_small_impl.1} parent=1 // pred_fallthru
      _
    %v18 = vld [vmem:[%s0] sm:$0xff]
    %v19 = vld [vmem:[%s0 + $0x8] sm:$0xff]
    %v20 = vmax.f32 %v18, 0.0
    %v21 = vmax.f32 %v19, 0.0
    %v22 = vmin.f32 %v20, 1.0
    %v23 = vmin.f32 %v21, 1.0
    %v24 = vld [vmem:[%s1] sm:$0x1]
    %v25 = vld [vmem:[%s2] sm:$0x1]
    %vm26 = vcmp.eq.s32.totalorder %v24, 0
    %v27 = vsel %vm26, 1, 0
    %v28 = vperm.slane %v27, 0
    %vm29 = vcmp.eq.s32.totalorder %v28, 1
    %31 = vset.pattern.permute.xlu0 0
    %32 = vperm.xlu0 %31, %v22
    %v33 = vpop.permute.xlu0 %32
    %36 = vset.pattern.permute.xlu0 0
    %37 = vperm.xlu0 %36, %v23
    %v38 = vpop.permute.xlu0 %37
    %v40 = vsel %vm29, %v33, 0.0
    %v41 = vsel %vm29, %v38, 0.0
    %vm42 = vcmp.eq.s32.totalorder %v25, 0
    %v43 = vsel %vm42, 1, 0
    %v44 = vperm.slane %v43, 0
    %vm45 = vcmp.eq.s32.totalorder %v44, 1
    %v46 = vsel %vm45, %v33, 0.0
    %v47 = vsel %vm45, %v38, 0.0
    %vm48 = vcmp.eq.s32.totalorder %v24, 1
    %v49 = vsel %vm48, 1, 0
    %v50 = vperm.slane %v49, 0
    %vm51 = vcmp.eq.s32.totalorder %v50, 1
    %52 = vset.pattern.permute.xlu0 1
    %53 = vperm.xlu0 %52, %v22
    %v54 = vpop.permute.xlu0 %53
    %56 = vset.pattern.permute.xlu0 1
    %57 = vperm.xlu0 %56, %v23
    %v58 = vpop.permute.xlu0 %57
    %v60 = vsel %vm51, %v54, %v40
    %v61 = vsel %vm51, %v58, %v41
    %vm62 = vcmp.eq.s32.totalorder %v25, 1
    %v63 = vsel %vm62, 1, 0
    %v64 = vperm.slane %v63, 0
    %vm65 = vcmp.eq.s32.totalorder %v64, 1
    %v66 = vsel %vm65, %v54, %v46
    %v67 = vsel %vm65, %v58, %v47
    %vm68 = vcmp.eq.s32.totalorder %v24, 2
    %v69 = vsel %vm68, 1, 0
    %v70 = vperm.slane %v69, 0
    %vm71 = vcmp.eq.s32.totalorder %v70, 1
    %72 = vset.pattern.permute.xlu0 2
    %73 = vperm.xlu0 %72, %v22
    %v74 = vpop.permute.xlu0 %73
    %76 = vset.pattern.permute.xlu0 2
    %77 = vperm.xlu0 %76, %v23
    %v78 = vpop.permute.xlu0 %77
    %v80 = vsel %vm71, %v74, %v60
    %v81 = vsel %vm71, %v78, %v61
    %vm82 = vcmp.eq.s32.totalorder %v25, 2
    %v83 = vsel %vm82, 1, 0
    %v84 = vperm.slane %v83, 0
    %vm85 = vcmp.eq.s32.totalorder %v84, 1
    %v86 = vsel %vm85, %v74, %v66
    %v87 = vsel %vm85, %v78, %v67
    %vm88 = vcmp.eq.s32.totalorder %v24, 3
    %v89 = vsel %vm88, 1, 0
    %v90 = vperm.slane %v89, 0
    %vm91 = vcmp.eq.s32.totalorder %v90, 1
    %92 = vset.pattern.permute.xlu0 3
    %93 = vperm.xlu0 %92, %v22
    %v94 = vpop.permute.xlu0 %93
    %96 = vset.pattern.permute.xlu0 3
    %97 = vperm.xlu0 %96, %v23
    %v98 = vpop.permute.xlu0 %97
    %v100 = vsel %vm91, %v94, %v80
    %v101 = vsel %vm91, %v98, %v81
    %vm102 = vcmp.eq.s32.totalorder %v25, 3
    %v103 = vsel %vm102, 1, 0
    %v104 = vperm.slane %v103, 0
    %vm105 = vcmp.eq.s32.totalorder %v104, 1
    %v106 = vsel %vm105, %v94, %v86
    %v107 = vsel %vm105, %v98, %v87
    %vm108 = vcmp.eq.s32.totalorder %v24, 4
    %v109 = vsel %vm108, 1, 0
    %v110 = vperm.slane %v109, 0
    %vm111 = vcmp.eq.s32.totalorder %v110, 1
    %112 = vset.pattern.permute.xlu0 4
    %113 = vperm.xlu0 %112, %v22
    %v114 = vpop.permute.xlu0 %113
    %116 = vset.pattern.permute.xlu0 4
    %117 = vperm.xlu0 %116, %v23
    %v118 = vpop.permute.xlu0 %117
    %v120 = vsel %vm111, %v114, %v100
    %v121 = vsel %vm111, %v118, %v101
    %vm122 = vcmp.eq.s32.totalorder %v25, 4
    %v123 = vsel %vm122, 1, 0
    %v124 = vperm.slane %v123, 0
    %vm125 = vcmp.eq.s32.totalorder %v124, 1
    %v126 = vsel %vm125, %v114, %v106
    %v127 = vsel %vm125, %v118, %v107
    %vm128 = vcmp.eq.s32.totalorder %v24, 5
    %v129 = vsel %vm128, 1, 0
    %v130 = vperm.slane %v129, 0
    %vm131 = vcmp.eq.s32.totalorder %v130, 1
    %132 = vset.pattern.permute.xlu0 5
    %133 = vperm.xlu0 %132, %v22
    %v134 = vpop.permute.xlu0 %133
    %136 = vset.pattern.permute.xlu0 5
    %137 = vperm.xlu0 %136, %v23
    %v138 = vpop.permute.xlu0 %137
    %v140 = vsel %vm131, %v134, %v120
    %v141 = vsel %vm131, %v138, %v121
    %vm142 = vcmp.eq.s32.totalorder %v25, 5
    %v143 = vsel %vm142, 1, 0
    %v144 = vperm.slane %v143, 0
    %vm145 = vcmp.eq.s32.totalorder %v144, 1
    %v146 = vsel %vm145, %v134, %v126
    %v147 = vsel %vm145, %v138, %v127
    %vm148 = vcmp.eq.s32.totalorder %v24, 6
    %v149 = vsel %vm148, 1, 0
    %v150 = vperm.slane %v149, 0
    %vm151 = vcmp.eq.s32.totalorder %v150, 1
    %152 = vset.pattern.permute.xlu0 6
    %153 = vperm.xlu0 %152, %v22
    %v154 = vpop.permute.xlu0 %153
    %156 = vset.pattern.permute.xlu0 6
    %157 = vperm.xlu0 %156, %v23
    %v158 = vpop.permute.xlu0 %157
    %v160 = vsel %vm151, %v154, %v140
    %v161 = vsel %vm151, %v158, %v141
    %vm162 = vcmp.eq.s32.totalorder %v25, 6
    %v163 = vsel %vm162, 1, 0
    %v164 = vperm.slane %v163, 0
    %vm165 = vcmp.eq.s32.totalorder %v164, 1
    %v166 = vsel %vm165, %v154, %v146
    %v167 = vsel %vm165, %v158, %v147
    %vm168 = vcmp.eq.s32.totalorder %v24, 7
    %v169 = vsel %vm168, 1, 0
    %v170 = vperm.slane %v169, 0
    %vm171 = vcmp.eq.s32.totalorder %v170, 1
    %172 = vset.pattern.permute.xlu0 7
    %173 = vperm.xlu0 %172, %v22
    %v174 = vpop.permute.xlu0 %173
    %176 = vset.pattern.permute.xlu0 7
    %177 = vperm.xlu0 %176, %v23
    %v178 = vpop.permute.xlu0 %177
    %v180 = vsel %vm171, %v174, %v160
    %v181 = vsel %vm171, %v178, %v161
    %vm182 = vcmp.eq.s32.totalorder %v25, 7
    %v183 = vsel %vm182, 1, 0
    %v184 = vperm.slane %v183, 0
    %vm185 = vcmp.eq.s32.totalorder %v184, 1
    %v186 = vsel %vm185, %v174, %v166
    %v187 = vsel %vm185, %v178, %v167
    %v188 = vld [vmem:[%s3] sm:$0xf]
    %v189 = vperm.slane %v188, 2
    %v190 = vmul.f32 %v189, %v186
    %v191 = vmul.f32 %v189, %v187
    %v192 = vperm.slane %v188, 0
    %v193 = vadd.f32 %v192, %v190
    %v194 = vadd.f32 %v192, %v191
    %v195 = vperm.slane %v188, 3
    %v196 = vmul.f32 %v195, %v186
    %v197 = vmul.f32 %v195, %v187
    %v198 = vperm.slane %v188, 1
    %v199 = vadd.f32 %v198, %v196
    %v200 = vadd.f32 %v198, %v197
    %v201 = vmul.f32 %v180, %v199
    %v202 = vmul.f32 %v181, %v200
    %v203 = vadd.f32 %v193, %v201
    %v204 = vadd.f32 %v194, %v202
    %vm205 = vcmask 130048
    %206 = vst.msk [vmem:[#allocation2] sm:$0xff] %vm205, %v203
    %207 = vst.msk [vmem:[#allocation2 + $0x8] sm:$0xff] %vm205, %v204
    // Predicated region
    $region18: #{_logic_layer_small_impl.1} parent=1 // pred_check
      _
    $region19: #{_logic_layer_small_impl.1} parent=1 // pred_check_branch
      %209 = sbr.rel (0) target = $region21
    $region20: #{_logic_layer_small_impl.1} parent=1 // pred_region
      %211 = vsyncadd [#allocation3], 0
      %s212 = sshll.u32 [#allocation2], 4
      %s213 = int_to_ptr.vmem [resolvable:$true] %s212
      %s214 = sshll.u32 %s4, 4
      %s215 = int_to_ptr.hbm [resolvable:$true] %s214
      %220 = dma.vmem_to_hbm [thread:$0]  %s213, 256, %s215, [#allocation3], 128, 128, 8
    $region21: #{_logic_layer_small_impl.1} parent=1 // pred_fallthru
      _
    // Predicated region
    $region22: #{_logic_layer_small_impl.1} parent=1 // pred_check
      _
    $region23: #{_logic_layer_small_impl.1} parent=1 // pred_check_branch
      %222 = sbr.rel (0) target = $region25
    $region24: #{_logic_layer_small_impl.1} parent=1 // pred_region
      %224 = dma.done [#allocation3], 256
    $region25: #{_logic_layer_small_impl.1} parent=1 // pred_fallthru
      _
    %225 = vsyncpa [#allocation3], 1

</llo_original>
